<compile_context>
chip_gen: v7x
topology: tpu7x:2x2x1
jax: 0.10.0
libtpu: 0.0.40
codegen_flags: <defaults>
</compile_context>

<pallas_src>
import jax
import jax.numpy as jnp
from jax.experimental import pallas as pl
from jax.experimental.pallas import tpu as pltpu


# ----------------------------------------------------------------------------
# Zero-copy path: outputs alias the input tables (no HBM traffic at all).
# ----------------------------------------------------------------------------
def _alias_noop_kernel(u_hbm, i_hbm, out_u_hbm, out_i_hbm):
    # Outputs are aliased to the inputs via input_output_aliases, so the
    # "lookup result" already lives in the output buffers: nothing to move.
    pass


def alias_identity_lookup(user_table, item_table):
    """table[arange(N)] for both tables with zero data movement.

    NOTE: input_output_aliases donates the input buffers.  Callers must not
    reuse the original input arrays afterwards (forward() rebinds them).
    """
    return pl.pallas_call(
        _alias_noop_kernel,
        out_shape=(jax.ShapeDtypeStruct(user_table.shape, user_table.dtype),
                   jax.ShapeDtypeStruct(item_table.shape, item_table.dtype)),
        in_specs=[pl.BlockSpec(memory_space=pl.ANY),
                  pl.BlockSpec(memory_space=pl.ANY)],
        out_specs=(pl.BlockSpec(memory_space=pl.ANY),
                   pl.BlockSpec(memory_space=pl.ANY)),
        input_output_aliases={0: 0, 1: 1},
        cost_estimate=pl.CostEstimate(flops=0, transcendentals=0,
                                      bytes_accessed=0),
    )(user_table, item_table)


# ----------------------------------------------------------------------------
# General path: direct HBM->HBM DMA copy of both tables in one launch.
# No VMEM staging, no tiling, no scoped-VMEM tuning; works for any table size.
# ----------------------------------------------------------------------------
def _dma_copy_kernel(u_hbm, i_hbm, out_u_hbm, out_i_hbm, sems):
    cu = pltpu.make_async_copy(u_hbm, out_u_hbm, sems.at[0])
    ci = pltpu.make_async_copy(i_hbm, out_i_hbm, sems.at[1])
    cu.start()
    ci.start()          # both tables' DMAs overlap
    cu.wait()
    ci.wait()


def dma_identity_lookup(user_table, item_table):
    """table[arange(N)] for both tables as fresh arrays (real HBM copy)."""
    tbl_bytes = (user_table.size * user_table.dtype.itemsize
                 + item_table.size * item_table.dtype.itemsize)
    return pl.pallas_call(
        _dma_copy_kernel,
        out_shape=(jax.ShapeDtypeStruct(user_table.shape, user_table.dtype),
                   jax.ShapeDtypeStruct(item_table.shape, item_table.dtype)),
        in_specs=[pl.BlockSpec(memory_space=pl.ANY),
                  pl.BlockSpec(memory_space=pl.ANY)],
        out_specs=(pl.BlockSpec(memory_space=pl.ANY),
                   pl.BlockSpec(memory_space=pl.ANY)),
        scratch_shapes=[pltpu.SemaphoreType.DMA((2,))],
        cost_estimate=pl.CostEstimate(flops=0, transcendentals=0,
                                      bytes_accessed=2 * tbl_bytes),
    )(user_table, item_table)


# ----------------------------------------------------------------------------
# Module
# ----------------------------------------------------------------------------
class SingleDomainPallas:
    """JAX/Pallas port of models.SingleDomain (forward pass only)."""

    def __init__(self, embedding_size, user_num, item_num, layer_num, key,
                 param_dtype=jnp.float32, model_structure="base"):
        keys = jax.random.split(key, 4 + 2 * layer_num)
        # nn.Embedding default init ~ N(0, 1).  param_dtype=jnp.bfloat16 halves
        # HBM traffic on the copy path if downstream numerics tolerate it.
        self.user_emb = jax.random.normal(
            keys[0], (user_num, embedding_size)).astype(param_dtype)
        self.item_emb = jax.random.normal(
            keys[1], (item_num, embedding_size)).astype(param_dtype)
        # Index tensors are arange(N); kept for semantic fidelity but the
        # kernels exploit the identity (no data-dependent gather needed).
        self.user_index = jnp.arange(user_num, dtype=jnp.int32)
        self.item_index = jnp.arange(item_num, dtype=jnp.int32)
        self.user_num = user_num
        self.item_num = item_num
        self.layer_num = layer_num
        self.model_structure = model_structure
        # Parameters below exist in the PyTorch __init__ but are NOT used by
        # forward(); initialized for shape fidelity only (not kaiming-uniform).
        self.linears = [
            (jax.random.normal(keys[2 + 2 * l],
                               (embedding_size, embedding_size)) * 0.02,
             jnp.zeros((embedding_size,)))
            for l in range(layer_num)
        ]
        self.predict_layer_u_w = jax.random.normal(
            keys[-2], (embedding_size * (layer_num + 1), embedding_size)) * 0.02
        self.predict_layer_i_w = jax.random.normal(
            keys[-1], (embedding_size * (layer_num + 1), embedding_size)) * 0.02
        # TODO(synk): predict_test_layer (Linear -> Softmax) and the linears /
        # predict layers are unused by forward(); no kernels are emitted.

    def forward(self):
        try:
            eu, ei = alias_identity_lookup(self.user_emb, self.item_emb)
            # input_output_aliases donates the table buffers; rebind the
            # parameters to the aliased outputs (same data, same HBM buffer)
            # so the module stays valid for repeated forward() calls.
            self.user_emb, self.item_emb = eu, ei
        except Exception:
            # Conservative fallback: direct HBM->HBM DMA copy (still no VMEM
            # staging, no scoped-VMEM tuning on any generation).
            eu, ei = dma_identity_lookup(self.user_emb, self.item_emb)
        return ([eu], [ei])


if __name__ == "__main__":
    key = jax.random.PRNGKey(0)
    embedding_size = 32
    user_num = 16
    item_num = 24
    layer_num = 2

    model = SingleDomainPallas(embedding_size, user_num, item_num,
                               layer_num, key)

    # Pure-JAX reference computed BEFORE forward(): the zero-copy path donates
    # the table buffers, so materialize the expected values (a fresh gather)
    # up front.
    ref_u = model.user_emb[model.user_index]
    ref_i = model.item_emb[model.item_index]
    ref_u, ref_i = jax.block_until_ready((ref_u, ref_i))

    (Eu, Ei) = model.forward()
    Eu[0] = jax.block_until_ready(Eu[0])
    Ei[0] = jax.block_until_ready(Ei[0])

    assert Eu[0].shape == (user_num, embedding_size)
    assert Ei[0].shape == (item_num, embedding_size)
    assert jnp.allclose(Eu[0], ref_u), "user embedding mismatch"
    assert jnp.allclose(Ei[0], ref_i), "item embedding mismatch"

    # Module must remain usable after the buffer-donating call.
    (Eu2, Ei2) = model.forward()
    Eu2[0] = jax.block_until_ready(Eu2[0])
    Ei2[0] = jax.block_until_ready(Ei2[0])
    assert jnp.allclose(Eu2[0], ref_u), "user embedding mismatch (2nd call)"
    assert jnp.allclose(Ei2[0], ref_i), "item embedding mismatch (2nd call)"

    # Also exercise the general (non-aliased) HBM->HBM DMA copy path with
    # larger, non-lane-aligned tables.
    big_u = jax.random.normal(jax.random.PRNGKey(1), (1024, 96), jnp.float32)
    big_i = jax.random.normal(jax.random.PRNGKey(2), (512, 96), jnp.float32)
    cu, ci = jax.block_until_ready(dma_identity_lookup(big_u, big_i))
    assert jnp.allclose(cu, big_u), "DMA copy mismatch (user)"
    assert jnp.allclose(ci, big_i), "DMA copy mismatch (item)"

    print("KERNEL_OK")
</pallas_src>

<mosaic_0001>
module attributes {stable_mosaic.version = 11 : i64} {
  func.func @_alias_noop_kernel(%arg0: memref<16x32xf32, #tpu.memory_space<any>>, %arg1: memref<24x32xf32, #tpu.memory_space<any>>, %arg2: memref<16x32xf32, #tpu.memory_space<any>>, %arg3: memref<24x32xf32, #tpu.memory_space<any>>) attributes {dimension_semantics = [], scalar_prefetch = 0 : i64, scratch_operands = 0 : i64, tpu.core_type = #tpu.core_type<tc>} {
    return
  }
}

module attributes {stable_mosaic.version = 11 : i64} {
  func.func @_dma_copy_kernel(%arg0: memref<16x32xf32, #tpu.memory_space<any>>, %arg1: memref<24x32xf32, #tpu.memory_space<any>>, %arg2: memref<16x32xf32, #tpu.memory_space<any>>, %arg3: memref<24x32xf32, #tpu.memory_space<any>>, %arg4: memref<2x!tpu.dma_semaphore, #tpu.memory_space<semaphore_mem>>) attributes {dimension_semantics = [], scalar_prefetch = 0 : i64, scratch_operands = 1 : i64, tpu.core_type = #tpu.core_type<tc>} {
    %c0_i32 = arith.constant 0 : i32
    %0 = tpu.memref_slice %arg4[%c0_i32] : memref<2x!tpu.dma_semaphore, #tpu.memory_space<semaphore_mem>> -> memref<1x!tpu.dma_semaphore, #tpu.memory_space<semaphore_mem>>
    %1 = tpu.memref_squeeze %0 : memref<1x!tpu.dma_semaphore, #tpu.memory_space<semaphore_mem>> -> memref<!tpu.dma_semaphore, #tpu.memory_space<semaphore_mem>>
    tpu.enqueue_dma source(%arg0 : memref<16x32xf32, #tpu.memory_space<any>>) target(%arg2 : memref<16x32xf32, #tpu.memory_space<any>>) target_semaphore(%1 : memref<!tpu.dma_semaphore, #tpu.memory_space<semaphore_mem>>)
    %c1_i32 = arith.constant 1 : i32
    %2 = tpu.memref_slice %arg4[%c1_i32] : memref<2x!tpu.dma_semaphore, #tpu.memory_space<semaphore_mem>> -> memref<1x!tpu.dma_semaphore, #tpu.memory_space<semaphore_mem>>
    %3 = tpu.memref_squeeze %2 : memref<1x!tpu.dma_semaphore, #tpu.memory_space<semaphore_mem>> -> memref<!tpu.dma_semaphore, #tpu.memory_space<semaphore_mem>>
    tpu.enqueue_dma source(%arg1 : memref<24x32xf32, #tpu.memory_space<any>>) target(%arg3 : memref<24x32xf32, #tpu.memory_space<any>>) target_semaphore(%3 : memref<!tpu.dma_semaphore, #tpu.memory_space<semaphore_mem>>)
    %c0_i32_0 = arith.constant 0 : i32
    %4 = tpu.memref_slice %arg4[%c0_i32_0] : memref<2x!tpu.dma_semaphore, #tpu.memory_space<semaphore_mem>> -> memref<1x!tpu.dma_semaphore, #tpu.memory_space<semaphore_mem>>
    %5 = tpu.memref_squeeze %4 : memref<1x!tpu.dma_semaphore, #tpu.memory_space<semaphore_mem>> -> memref<!tpu.dma_semaphore, #tpu.memory_space<semaphore_mem>>
    tpu.wait_dma2 semaphore(%5 : memref<!tpu.dma_semaphore, #tpu.memory_space<semaphore_mem>>) src(%arg0 : memref<16x32xf32, #tpu.memory_space<any>>) dst(%arg2 : memref<16x32xf32, #tpu.memory_space<any>>)
    %c1_i32_1 = arith.constant 1 : i32
    %6 = tpu.memref_slice %arg4[%c1_i32_1] : memref<2x!tpu.dma_semaphore, #tpu.memory_space<semaphore_mem>> -> memref<1x!tpu.dma_semaphore, #tpu.memory_space<semaphore_mem>>
    %7 = tpu.memref_squeeze %6 : memref<1x!tpu.dma_semaphore, #tpu.memory_space<semaphore_mem>> -> memref<!tpu.dma_semaphore, #tpu.memory_space<semaphore_mem>>
    tpu.wait_dma2 semaphore(%7 : memref<!tpu.dma_semaphore, #tpu.memory_space<semaphore_mem>>) src(%arg1 : memref<24x32xf32, #tpu.memory_space<any>>) dst(%arg3 : memref<24x32xf32, #tpu.memory_space<any>>)
    return
  }
}

</mosaic_0001>

<llo_original>
// kernel: tpu_custom_call.1
$region0: #{tpu_custom_call.1}
  #allocation0 [shape = 'u32[]', space=smem, size = 0x4, offset = 0x4, fixed_abs, tag = 'smem constant byte address 0x4 - core index']
  #allocation1 [shape = 'u32[144,128]{1,0:T(1,128)}', space=vmem, size = 0x12000, scoped, tag = 'internal scratch']
  %s0 = inlined_call_operand.hbm [shape: f32[16,32], index: 0, kind: input, shape index: {}, may-alias: {0,2}]
  %s1 = inlined_call_operand.hbm [shape: f32[24,32], index: 1, kind: input, shape index: {}, may-alias: {1,3}]
  %s2 = inlined_call_operand.hbm [shape: f32[16,32], index: 2, kind: output, shape index: {0}, may-alias: {0,2}]
  %s3 = inlined_call_operand.hbm [shape: f32[24,32], index: 3, kind: output, shape index: {1}, may-alias: {1,3}]
  %4 = xla_tuple %s2, %s3
  %s5 = sld [smem:[#allocation0]]
  $region2: #{tpu_custom_call.1} parent=0
    _
  %s7 = ssub.s32 1, %s5
  %s8 = scalar_select 0, %s7, %s5

// kernel: tpu_custom_call.1
$region0: #{tpu_custom_call.1}
  #allocation0 [shape = 'u32[]', space=smem, size = 0x4, offset = 0x4, fixed_abs, tag = 'smem constant byte address 0x4 - core index']
  #allocation1 [shape = 'u32[144,128]{1,0:T(1,128)}', space=vmem, size = 0x12000, scoped, tag = 'internal scratch']
  #allocation2 [shape = 's32[2]{0}', space=sflag, size = 0x8, scoped, tag = 'scratch operand']
  #allocation3 [shape = 's32[]', space=sflag, size = 0x4, offset = 0, fixed_abs, tag = 'sflag constant byte address 0x0 - dummy sync flag']
  #allocation4 [shape = 'u32[0]{0}', space=smem, size = 0, offset = 0, fixed_abs, tag = 'smem constant byte address 0x0 - null']
  #allocation5 [shape = 's32[]', space=sflag, size = 0x4, offset = 0, fixed_abs, tag = 'sflag constant byte address 0x0 - dummy sync flag']
  #allocation6 [shape = 'u32[0]{0}', space=smem, size = 0, offset = 0, fixed_abs, tag = 'smem constant byte address 0x0 - null']
  %s0 = inlined_call_operand.hbm [shape: f32[16,32], index: 0, kind: input, shape index: {}]
  %s1 = inlined_call_operand.hbm [shape: f32[24,32], index: 1, kind: input, shape index: {}]
  %s2 = inlined_call_operand.hbm [shape: f32[16,32], index: 2, kind: output, shape index: {0}]
  %s3 = inlined_call_operand.hbm [shape: f32[24,32], index: 3, kind: output, shape index: {1}]
  %4 = xla_tuple %s2, %s3
  %s5 = sld [smem:[#allocation0]]
  $region2: #{tpu_custom_call.1} parent=0
    _
  %s7 = ssub.s32 1, %s5
  %s8 = scalar_select 0, %s7, %s5
  %s10 = sshll.u32 1, 14
  %s11 = sxor.u32 4294967295, %s10
  %s14 = sshll.u32 3, 24
  %s15 = sxor.u32 4294967295, %s14
  %s16 = sand.u32 0, %s15
  %s18 = sor.u32 %s16, 0
  %21 = dma.general %s0, 256, %s2, [#allocation2], [#allocation3], [#allocation4], %s18, 0
  %s22 = scalar_lea.sflag [#allocation2], 1
  %s24 = sshll.u32 1, 14
  %s25 = sxor.u32 4294967295, %s24
  %s28 = sshll.u32 3, 24
  %s29 = sxor.u32 4294967295, %s28
  %s30 = sand.u32 0, %s29
  %s32 = sor.u32 %s30, 0
  %35 = dma.general %s1, 384, %s3, %s22, [#allocation5], [#allocation6], %s32, 0
  %s36 = smul.u32 16, 1
  %s37 = sshll.u32 %s36, 4
  %38 = dma.done [#allocation2], %s37
  %s39 = smul.u32 24, 1
  %s40 = sshll.u32 %s39, 4
  %41 = dma.done %s22, %s40
  %42 = vsyncmov [#allocation2]
  %s43 = vpop.sfrf %42
  %p44 = scmp.eq.s32.totalorder %s43, 0
  %p45 = pneg %p44
  %47 = shalt.err (%p45)
  %s48 = scalar_lea.sflag [#allocation2], 1
  %49 = vsyncmov %s48
  %s50 = vpop.sfrf %49
  %p51 = scmp.eq.s32.totalorder %s50, 0
  %p52 = pneg %p51
  %54 = shalt.err (%p52)

</llo_original>
